<compile_context>
chip_gen: v5e
topology: v5e:2x2
jax: 0.10.0
libtpu: 0.0.40
codegen_flags: <defaults>
</compile_context>

<pallas_src>
import functools
import math

import jax
import jax.numpy as jnp
from jax.experimental import pallas as pl
from jax.experimental.pallas import tpu as pltpu


def mdn_fused_kernel(x_ref, w_ref, b_ref, out_ref, *, k, ko, slab):
    # Single fused matmul: (BB, D) @ (D, N_pad) -> (BB, N_pad), N_pad % 128 == 0.
    y = jnp.dot(x_ref[...], w_ref[...], preferred_element_type=jnp.float32)
    y = y + b_ref[...]
    n_pad = y.shape[1]

    # ---- pi head: softmax restricted to the first `slab` lanes -------------
    # `slab` is a static, 128-aligned width covering all k pi lanes, so the
    # cross-lane max/sum (XLU) never scale with n_pad. Non-pi lanes inside the
    # slab are masked to -inf so they never enter the denominator.
    ys = y[:, :slab]
    pi_mask = jax.lax.broadcasted_iota(jnp.int32, ys.shape, 1) < k
    m = jnp.max(jnp.where(pi_mask, ys, -jnp.inf), axis=1, keepdims=True)  # (BB, 1)

    # ---- single shared exponential over the tile ----------------------------
    # sigma = exp(y) is recovered as exp(y - m) * exp(m); m is bounded by the
    # pi logits so this is numerically safe for sane inputs, and it halves the
    # full-width EUP transcendental volume vs. a second jnp.exp(y).
    e = jnp.exp(y - m)

    e_pi = jnp.where(pi_mask, e[:, :slab], 0.0)
    denom = jnp.sum(e_pi, axis=1, keepdims=True)
    # Exact reciprocal (plain divide on a (BB,1) column): keeps sum(pi) == 1 to
    # float rounding. approx=True previously violated that by ~1e-3.
    pi = e_pi / denom

    sig = e * jnp.exp(m)  # == exp(y)

    # ---- mu head: identity ---------------------------------------------------
    # Padded lanes carry y == 0 ONLY because W and b are zero padded in the
    # wrapper (correctness invariant); they are sliced off after the call.
    col = jax.lax.broadcasted_iota(jnp.int32, y.shape, 1)
    is_sigma = (col >= k) & (col < k + ko)
    rest = jnp.where(is_sigma, sig, y)

    # Lane-dense stores: full width beyond the pi slab, then the slab with pi
    # lanes overwritten. (slab is a static multiple of 128.)
    if slab < n_pad:
        out_ref[:, slab:] = rest[:, slab:]
    out_ref[:, :slab] = jnp.where(pi_mask, pi, rest[:, :slab])


def mdn_forward(x, params, k, output_dim, *, block_b=1024, compute_dtype=None):
    """Fused MDN forward. x: (B, input_dim) f32 -> (pi, sigma, mu)."""
    B, D = x.shape
    ko = k * output_dim
    n = k + 2 * ko
    wpi, bpi, wsig, bsig, wmu, bmu = params

    # Fuse the three heads along the output dim; zero-pad to a lane-dense
    # multiple of 128. NOTE: the zero padding of W/b is a correctness invariant
    # (padded lanes must yield 0 so the wrapper slice is exact).
    w = jnp.concatenate([wpi, wsig, wmu], axis=1)   # (D, n)
    b = jnp.concatenate([bpi, bsig, bmu], axis=1)   # (1, n)
    n_pad = ((n + 127) // 128) * 128
    if n_pad != n:
        w = jnp.pad(w, ((0, 0), (0, n_pad - n)))
        b = jnp.pad(b, ((0, 0), (0, n_pad - n)))

    # Optional reduced-precision matmul operands (recommended: jnp.bfloat16 on
    # v6e/v7x deployments). Bias and accumulation stay f32.
    if compute_dtype is not None:
        x = x.astype(compute_dtype)
        w = w.astype(compute_dtype)
    x_bytes = jnp.dtype(x.dtype).itemsize

    # pi-softmax slab: smallest 128-lane multiple covering the k pi lanes.
    slab = min(n_pad, ((k + 127) // 128) * 128)

    # Batch tiling: keep bb a multiple of 8 (sublane) unless it equals B, and
    # cap it at ~ceil(B/2) so the "parallel" batch axis has >= 2 grid steps and
    # can shard across both TensorCores on v7x.
    bb = min(block_b, B)
    if B > 8:
        half = ((pl.cdiv(B, 2) + 7) // 8) * 8
        bb = min(bb, half)
    if bb != B:
        bb = max(8, (bb // 8) * 8)
    grid = (pl.cdiv(B, bb),)

    # Rough VMEM budget: double-buffered x/out streams + single-buffered W/b,
    # plus headroom; clamp so we never request more than sensible physical VMEM.
    vmem_bytes = (2 * bb * D * x_bytes + 2 * bb * n_pad * 4
                  + D * n_pad * x_bytes + n_pad * 4) + (4 << 20)
    vmem_limit = int(min(max(vmem_bytes, 32 << 20), 100 << 20))

    kernel = functools.partial(mdn_fused_kernel, k=k, ko=ko, slab=slab)

    def call(single_buffer_resident):
        if single_buffer_resident:
            # Resident operands never change (constant index_map -> no re-DMA):
            # one buffer suffices; frees D*n_pad*bytes of VMEM (v7x: 64 MiB).
            w_spec = pl.BlockSpec((D, n_pad), lambda i: (0, 0),
                                  pipeline_mode=pl.Buffered(1))
            b_spec = pl.BlockSpec((1, n_pad), lambda i: (0, 0),
                                  pipeline_mode=pl.Buffered(1))
        else:
            w_spec = pl.BlockSpec((D, n_pad), lambda i: (0, 0))
            b_spec = pl.BlockSpec((1, n_pad), lambda i: (0, 0))
        return pl.pallas_call(
            kernel,
            out_shape=jax.ShapeDtypeStruct((B, n_pad), jnp.float32),
            grid=grid,
            in_specs=[
                pl.BlockSpec((bb, D), lambda i: (i, 0)),   # x tile, streamed
                w_spec,                                    # fused W, resident
                b_spec,                                    # fused bias, resident
            ],
            out_specs=pl.BlockSpec((bb, n_pad), lambda i: (i, 0)),
            compiler_params=pltpu.CompilerParams(
                dimension_semantics=("parallel",),
                vmem_limit_bytes=vmem_limit,
            ),
        )(x, w, b)

    try:
        out = call(True)
    except Exception:
        # Fallback for jax versions where pipeline_mode=pl.Buffered(1) is not
        # accepted on a top-level pallas_call BlockSpec.
        out = call(False)

    # TODO(synk): for very large input_dim (D >= ~2K) on v7x, add a K grid axis
    # with an f32 VMEM accumulator instead of keeping the full W resident.
    # TODO(synk): if downstream tolerates bf16, emit the fused output in bf16
    # to halve the (B, n_pad) HBM writeback (the dominant memory stream).

    pi = out[:, :k]
    sigma = out[:, k:k + ko].reshape(B, k, output_dim)
    mu = out[:, k + ko:k + 2 * ko].reshape(B, k, output_dim)
    return pi, sigma, mu


def init_mdn_params(key, input_dim, output_dim, k):
    """Deterministic init mimicking torch.nn.Linear default (U[-1/sqrt(fan_in), +])."""
    ko = k * output_dim
    bound = 1.0 / math.sqrt(input_dim)
    keys = jax.random.split(key, 6)
    wpi = jax.random.uniform(keys[0], (input_dim, k), jnp.float32, -bound, bound)
    bpi = jax.random.uniform(keys[1], (1, k), jnp.float32, -bound, bound)
    wsig = jax.random.uniform(keys[2], (input_dim, ko), jnp.float32, -bound, bound)
    bsig = jax.random.uniform(keys[3], (1, ko), jnp.float32, -bound, bound)
    wmu = jax.random.uniform(keys[4], (input_dim, ko), jnp.float32, -bound, bound)
    bmu = jax.random.uniform(keys[5], (1, ko), jnp.float32, -bound, bound)
    return wpi, bpi, wsig, bsig, wmu, bmu


def mdn_reference(x, params, k, output_dim):
    """Pure-JAX reference for correctness check."""
    wpi, bpi, wsig, bsig, wmu, bmu = params
    pi = jax.nn.softmax(x @ wpi + bpi, axis=1)
    sigma = jnp.exp(x @ wsig + bsig).reshape(-1, k, output_dim)
    mu = (x @ wmu + bmu).reshape(-1, k, output_dim)
    return pi, sigma, mu


if __name__ == "__main__":
    B, input_dim, output_dim, k = 8, 32, 4, 5

    key = jax.random.PRNGKey(0)
    kx, kp = jax.random.split(key)
    x = jax.random.normal(kx, (B, input_dim), jnp.float32)
    params = init_mdn_params(kp, input_dim, output_dim, k)

    pi, sigma, mu = jax.block_until_ready(mdn_forward(x, params, k, output_dim))

    # Sanity check vs pure-JAX reference. Tolerances absorb MXU default-precision
    # differences between the fused in-kernel matmul and the XLA reference matmul.
    pi_r, sigma_r, mu_r = mdn_reference(x, params, k, output_dim)
    assert pi.shape == (B, k)
    assert sigma.shape == (B, k, output_dim)
    assert mu.shape == (B, k, output_dim)
    assert jnp.allclose(pi, pi_r, atol=2e-3, rtol=2e-3)
    # Exact-reciprocal softmax -> rows sum to 1 to float rounding.
    assert jnp.allclose(jnp.sum(pi, axis=1), jnp.ones((B,), jnp.float32), atol=1e-5)
    assert jnp.allclose(sigma, sigma_r, atol=2e-3, rtol=2e-3)
    assert jnp.allclose(mu, mu_r, atol=2e-3, rtol=2e-3)

    print("KERNEL_OK")
</pallas_src>

<mosaic_0001>
module attributes {stable_mosaic.version = 11 : i64} {
  func.func @mdn_fused_kernel(%arg0: i32, %arg1: memref<8x32xf32, #tpu.memory_space<vmem>>, %arg2: memref<32x128xf32, #tpu.memory_space<vmem>>, %arg3: memref<1x128xf32, #tpu.memory_space<vmem>>, %arg4: memref<8x128xf32, #tpu.memory_space<vmem>>) attributes {dimension_semantics = [#tpu.dimension_semantics<parallel>], iteration_bounds = array<i64: 1>, scalar_prefetch = 0 : i64, scratch_operands = 0 : i64, tpu.core_type = #tpu.core_type<tc>, window_params = [{transform_indices = @transform_0, window_bounds = array<i64: 8, 32>}, {pipeline_mode = #tpu.pipeline_mode<synchronous>, transform_indices = @transform_1, window_bounds = array<i64: 32, 128>}, {pipeline_mode = #tpu.pipeline_mode<synchronous>, transform_indices = @transform_2, window_bounds = array<i64: 1, 128>}, {transform_indices = @transform_3, window_bounds = array<i64: 8, 128>}]} {
    %c0 = arith.constant 0 : index
    %c0_0 = arith.constant 0 : index
    %0 = vector.load %arg1[%c0, %c0_0] : memref<8x32xf32, #tpu.memory_space<vmem>>, vector<8x32xf32>
    %c0_1 = arith.constant 0 : index
    %c0_2 = arith.constant 0 : index
    %1 = vector.load %arg2[%c0_1, %c0_2] : memref<32x128xf32, #tpu.memory_space<vmem>>, vector<32x128xf32>
    %cst = arith.constant dense<0.000000e+00> : vector<8x128xf32>
    %2 = tpu.matmul %0, %1, %cst {dimension_numbers = #tpu.dot_dimension_numbers<[1], [0], [0], [1], [0, 0, 1, 1], [], []>} : vector<8x32xf32>, vector<32x128xf32>, vector<8x128xf32> -> vector<8x128xf32>
    %c0_3 = arith.constant 0 : index
    %c0_4 = arith.constant 0 : index
    %3 = vector.load %arg3[%c0_3, %c0_4] : memref<1x128xf32, #tpu.memory_space<vmem>>, vector<1x128xf32>
    %4 = vector.broadcast %3 : vector<1x128xf32> to vector<8x128xf32>
    %5 = arith.addf %2, %4 : vector<8x128xf32>
    %6 = tpu.iota {dimensions = array<i32: 1>} : vector<8x128xi32>
    %c5_i32 = arith.constant 5 : i32
    %7 = vector.broadcast %c5_i32 : i32 to vector<8x128xi32>
    %8 = arith.cmpi slt, %6, %7 : vector<8x128xi32>
    %cst_5 = arith.constant 0xFF800000 : f32
    %9 = vector.broadcast %cst_5 : f32 to vector<8x128xf32>
    %10 = arith.select %8, %5, %9 : vector<8x128xi1>, vector<8x128xf32>
    %cst_6 = arith.constant dense<0xFF800000> : vector<8xf32>
    %11 = vector.multi_reduction <maximumf>, %10, %cst_6 [1] : vector<8x128xf32> to vector<8xf32>
    %12 = vector.shape_cast %11 : vector<8xf32> to vector<8x1xf32>
    %13 = vector.broadcast %12 : vector<8x1xf32> to vector<8x128xf32>
    %14 = arith.subf %5, %13 : vector<8x128xf32>
    %15 = math.exp %14 : vector<8x128xf32>
    %cst_7 = arith.constant 0.000000e+00 : f32
    %16 = vector.broadcast %cst_7 : f32 to vector<8x128xf32>
    %17 = arith.select %8, %15, %16 : vector<8x128xi1>, vector<8x128xf32>
    %cst_8 = arith.constant dense<0.000000e+00> : vector<8xf32>
    %18 = vector.multi_reduction <add>, %17, %cst_8 [1] : vector<8x128xf32> to vector<8xf32>
    %19 = vector.shape_cast %18 : vector<8xf32> to vector<8x1xf32>
    %20 = vector.broadcast %19 : vector<8x1xf32> to vector<8x128xf32>
    %21 = arith.divf %17, %20 : vector<8x128xf32>
    %22 = math.exp %12 : vector<8x1xf32>
    %23 = vector.broadcast %22 : vector<8x1xf32> to vector<8x128xf32>
    %24 = arith.mulf %15, %23 : vector<8x128xf32>
    %25 = tpu.iota {dimensions = array<i32: 1>} : vector<8x128xi32>
    %c5_i32_9 = arith.constant 5 : i32
    %26 = vector.broadcast %c5_i32_9 : i32 to vector<8x128xi32>
    %27 = arith.cmpi sge, %25, %26 : vector<8x128xi32>
    %c25_i32 = arith.constant 25 : i32
    %28 = vector.broadcast %c25_i32 : i32 to vector<8x128xi32>
    %29 = arith.cmpi slt, %25, %28 : vector<8x128xi32>
    %30 = arith.andi %27, %29 : vector<8x128xi1>
    %31 = arith.select %30, %24, %5 : vector<8x128xi1>, vector<8x128xf32>
    %32 = arith.select %8, %21, %31 : vector<8x128xi1>, vector<8x128xf32>
    %c0_10 = arith.constant 0 : index
    %c0_11 = arith.constant 0 : index
    %33 = vector.load %arg4[%c0_10, %c0_11] : memref<8x128xf32, #tpu.memory_space<vmem>>, vector<8x128xf32>
    tpu.vector_store %arg4[%c0_10, %c0_11], %32 {strides = array<i32>} : memref<8x128xf32, #tpu.memory_space<vmem>>, vector<8x128xf32>,
    return
  }
  func.func @transform_0(%arg0: i32) -> (i32, i32) {
    %c0_i32 = arith.constant 0 : i32
    %c0_i32_0 = arith.constant 0 : i32
    return %arg0, %c0_i32 : i32, i32
  }
  func.func @transform_1(%arg0: i32) -> (i32, i32) {
    %c0_i32 = arith.constant 0 : i32
    %c0_i32_0 = arith.constant 0 : i32
    %c0_i32_1 = arith.constant 0 : i32
    return %c0_i32, %c0_i32_0 : i32, i32
  }
  func.func @transform_2(%arg0: i32) -> (i32, i32) {
    %c0_i32 = arith.constant 0 : i32
    %c0_i32_0 = arith.constant 0 : i32
    %c0_i32_1 = arith.constant 0 : i32
    return %c0_i32, %c0_i32_0 : i32, i32
  }
  func.func @transform_3(%arg0: i32) -> (i32, i32) {
    %c0_i32 = arith.constant 0 : i32
    %c0_i32_0 = arith.constant 0 : i32
    return %arg0, %c0_i32 : i32, i32
  }
}

module attributes {stable_mosaic.version = 11 : i64} {
  func.func @mdn_fused_kernel(%arg0: i32, %arg1: memref<8x32xf32, #tpu.memory_space<vmem>>, %arg2: memref<32x128xf32, #tpu.memory_space<vmem>>, %arg3: memref<1x128xf32, #tpu.memory_space<vmem>>, %arg4: memref<8x128xf32, #tpu.memory_space<vmem>>) attributes {dimension_semantics = [#tpu.dimension_semantics<parallel>], iteration_bounds = array<i64: 1>, scalar_prefetch = 0 : i64, scratch_operands = 0 : i64, tpu.core_type = #tpu.core_type<tc>, window_params = [{transform_indices = @transform_0, window_bounds = array<i64: 8, 32>}, {pipeline_mode = #tpu.pipeline_mode<synchronous>, transform_indices = @transform_1, window_bounds = array<i64: 32, 128>}, {pipeline_mode = #tpu.pipeline_mode<synchronous>, transform_indices = @transform_2, window_bounds = array<i64: 1, 128>}, {transform_indices = @transform_3, window_bounds = array<i64: 8, 128>}]} {
    %c0 = arith.constant 0 : index
    %c0_0 = arith.constant 0 : index
    %0 = vector.load %arg1[%c0, %c0_0] : memref<8x32xf32, #tpu.memory_space<vmem>>, vector<8x32xf32>
    %c0_1 = arith.constant 0 : index
    %c0_2 = arith.constant 0 : index
    %1 = vector.load %arg2[%c0_1, %c0_2] : memref<32x128xf32, #tpu.memory_space<vmem>>, vector<32x128xf32>
    %cst = arith.constant dense<0.000000e+00> : vector<8x128xf32>
    %2 = tpu.matmul %0, %1, %cst {dimension_numbers = #tpu.dot_dimension_numbers<[1], [0], [0], [1], [0, 0, 1, 1], [], []>} : vector<8x32xf32>, vector<32x128xf32>, vector<8x128xf32> -> vector<8x128xf32>
    %c0_3 = arith.constant 0 : index
    %c0_4 = arith.constant 0 : index
    %3 = vector.load %arg3[%c0_3, %c0_4] : memref<1x128xf32, #tpu.memory_space<vmem>>, vector<1x128xf32>
    %4 = vector.broadcast %3 : vector<1x128xf32> to vector<8x128xf32>
    %5 = arith.addf %2, %4 : vector<8x128xf32>
    %6 = tpu.iota {dimensions = array<i32: 1>} : vector<8x128xi32>
    %c5_i32 = arith.constant 5 : i32
    %7 = vector.broadcast %c5_i32 : i32 to vector<8x128xi32>
    %8 = arith.cmpi slt, %6, %7 : vector<8x128xi32>
    %cst_5 = arith.constant 0xFF800000 : f32
    %9 = vector.broadcast %cst_5 : f32 to vector<8x128xf32>
    %10 = arith.select %8, %5, %9 : vector<8x128xi1>, vector<8x128xf32>
    %cst_6 = arith.constant dense<0xFF800000> : vector<8xf32>
    %11 = vector.multi_reduction <maximumf>, %10, %cst_6 [1] : vector<8x128xf32> to vector<8xf32>
    %12 = vector.shape_cast %11 : vector<8xf32> to vector<8x1xf32>
    %13 = vector.broadcast %12 : vector<8x1xf32> to vector<8x128xf32>
    %14 = arith.subf %5, %13 : vector<8x128xf32>
    %15 = math.exp %14 : vector<8x128xf32>
    %cst_7 = arith.constant 0.000000e+00 : f32
    %16 = vector.broadcast %cst_7 : f32 to vector<8x128xf32>
    %17 = arith.select %8, %15, %16 : vector<8x128xi1>, vector<8x128xf32>
    %cst_8 = arith.constant dense<0.000000e+00> : vector<8xf32>
    %18 = vector.multi_reduction <add>, %17, %cst_8 [1] : vector<8x128xf32> to vector<8xf32>
    %19 = vector.shape_cast %18 : vector<8xf32> to vector<8x1xf32>
    %20 = vector.broadcast %19 : vector<8x1xf32> to vector<8x128xf32>
    %21 = arith.divf %17, %20 : vector<8x128xf32>
    %22 = math.exp %12 : vector<8x1xf32>
    %23 = vector.broadcast %22 : vector<8x1xf32> to vector<8x128xf32>
    %24 = arith.mulf %15, %23 : vector<8x128xf32>
    %25 = tpu.iota {dimensions = array<i32: 1>} : vector<8x128xi32>
    %c5_i32_9 = arith.constant 5 : i32
    %26 = vector.broadcast %c5_i32_9 : i32 to vector<8x128xi32>
    %27 = arith.cmpi sge, %25, %26 : vector<8x128xi32>
    %c25_i32 = arith.constant 25 : i32
    %28 = vector.broadcast %c25_i32 : i32 to vector<8x128xi32>
    %29 = arith.cmpi slt, %25, %28 : vector<8x128xi32>
    %30 = arith.andi %27, %29 : vector<8x128xi1>
    %31 = arith.select %30, %24, %5 : vector<8x128xi1>, vector<8x128xf32>
    %32 = arith.select %8, %21, %31 : vector<8x128xi1>, vector<8x128xf32>
    %c0_10 = arith.constant 0 : index
    %c0_11 = arith.constant 0 : index
    %33 = vector.load %arg4[%c0_10, %c0_11] : memref<8x128xf32, #tpu.memory_space<vmem>>, vector<8x128xf32>
    tpu.vector_store %arg4[%c0_10, %c0_11], %32 {strides = array<i32>} : memref<8x128xf32, #tpu.memory_space<vmem>>, vector<8x128xf32>,
    return
  }
  func.func @transform_0(%arg0: i32) -> (i32, i32) {
    %c0_i32 = arith.constant 0 : i32
    %c0_i32_0 = arith.constant 0 : i32
    return %arg0, %c0_i32 : i32, i32
  }
  func.func @transform_1(%arg0: i32) -> (i32, i32) {
    %c0_i32 = arith.constant 0 : i32
    %c0_i32_0 = arith.constant 0 : i32
    %c0_i32_1 = arith.constant 0 : i32
    return %c0_i32, %c0_i32_0 : i32, i32
  }
  func.func @transform_2(%arg0: i32) -> (i32, i32) {
    %c0_i32 = arith.constant 0 : i32
    %c0_i32_0 = arith.constant 0 : i32
    %c0_i32_1 = arith.constant 0 : i32
    return %c0_i32, %c0_i32_0 : i32, i32
  }
  func.func @transform_3(%arg0: i32) -> (i32, i32) {
    %c0_i32 = arith.constant 0 : i32
    %c0_i32_0 = arith.constant 0 : i32
    return %arg0, %c0_i32 : i32, i32
  }
}

</mosaic_0001>

<llo_original>
// kernel: tpu_custom_call.1
$region0: #{tpu_custom_call.1}
  #allocation0 [shape = 'u32[]', space=smem, size = 0x4, offset = 0x4, fixed_abs, tag = 'smem constant byte address 0x4 - core index']
  #allocation1 [shape = 'u32[72,128]{1,0:T(1,128)}', space=vmem, size = 0x9000, scoped, tag = 'internal scratch']
  %s0 = inlined_call_operand.hbm [shape: f32[8,32], index: 0, kind: input, shape index: {}]
  %s1 = inlined_call_operand.hbm [shape: f32[32,128], index: 1, kind: input, shape index: {}]
  %s2 = inlined_call_operand.vmem [shape: f32[1,128], index: 2, kind: input, shape index: {}]
  %s3 = inlined_call_operand.hbm [shape: f32[8,128], index: 3, kind: output, shape index: {}]
  %s4 = sld [smem:[#allocation0]]
  $region30: #{tpu_custom_call.1} parent=0
    _
  %s6 = ssub.s32 1, %s4
  %s7 = scalar_select 0, %s6, %s4
  $region1: #{tpu_custom_call.1} parent=0
    #allocation2 [shape = 'u8[4096]{0}', space=vmem, size = 0x1000, scoped, tag = 'input window, operand 0, single buffered']
    #allocation3 [shape = 's32[1]{0}', space=sflag, size = 0x4, scoped, tag = 'scoped memory for tpu_custom_call.1']
    #allocation4 [shape = 's32[1]{0}', space=sflag, size = 0x4, scoped, tag = 'scoped memory for tpu_custom_call.1']
    #allocation5 [shape = 'u8[16384]{0}', space=vmem, size = 0x4000, scoped, tag = 'input window, operand 1, single buffered']
    #allocation6 [shape = 's32[1]{0}', space=sflag, size = 0x4, scoped, tag = 'scoped memory for tpu_custom_call.1']
    #allocation7 [shape = 'u8[4096]{0}', space=vmem, size = 0x1000, scoped, tag = 'output window, operand 0, single buffered']
    %8 = vsyncpa [#allocation3], 0
    %9 = vsyncpa [#allocation6], 0
    %10 = vsyncpa [#allocation4], 0
    // Predicated region
    $region2: #{tpu_custom_call.1} parent=1 // pred_check
      _
    $region3: #{tpu_custom_call.1} parent=1 // pred_check_branch
      %12 = sbr.rel (0) target = $region5
    $region4: #{tpu_custom_call.1} parent=1 // pred_region
      %14 = vsyncadd [#allocation3], 0
      %s16 = sshll.u32 %s0, 4
      %s17 = int_to_ptr.hbm [resolvable:$true] %s16
      %s18 = sshll.u32 [#allocation2], 4
      %s19 = int_to_ptr.vmem [resolvable:$true] %s18
      %21 = dma.hbm_to_vmem [thread:$0]  %s17, 128, %s19, [#allocation3]
    $region5: #{tpu_custom_call.1} parent=1 // pred_fallthru
      _
    // Predicated region
    $region6: #{tpu_custom_call.1} parent=1 // pred_check
      _
    $region7: #{tpu_custom_call.1} parent=1 // pred_check_branch
      %23 = sbr.rel (0) target = $region9
    $region8: #{tpu_custom_call.1} parent=1 // pred_region
      %25 = vsyncadd [#allocation6], 0
      %s26 = sshll.u32 %s1, 4
      %s27 = int_to_ptr.hbm [resolvable:$true] %s26
      %s28 = sshll.u32 [#allocation5], 4
      %s29 = int_to_ptr.vmem [resolvable:$true] %s28
      %34 = dma.hbm_to_vmem [thread:$0]  %s27, 512, %s29, [#allocation6], 128, 128, 8
    $region9: #{tpu_custom_call.1} parent=1 // pred_fallthru
      _
    // Predicated region
    $region10: #{tpu_custom_call.1} parent=1 // pred_check
      _
    $region11: #{tpu_custom_call.1} parent=1 // pred_check_branch
      %36 = sbr.rel (0) target = $region13
    $region12: #{tpu_custom_call.1} parent=1 // pred_region
      _
    $region13: #{tpu_custom_call.1} parent=1 // pred_fallthru
      _
    // Predicated region
    $region14: #{tpu_custom_call.1} parent=1 // pred_check
      _
    $region15: #{tpu_custom_call.1} parent=1 // pred_check_branch
      %38 = sbr.rel (0) target = $region17
    $region16: #{tpu_custom_call.1} parent=1 // pred_region
      %40 = dma.done [#allocation3], 128
    $region17: #{tpu_custom_call.1} parent=1 // pred_fallthru
      _
    // Predicated region
    $region18: #{tpu_custom_call.1} parent=1 // pred_check
      _
    $region19: #{tpu_custom_call.1} parent=1 // pred_check_branch
      %42 = sbr.rel (0) target = $region21
    $region20: #{tpu_custom_call.1} parent=1 // pred_region
      %44 = dma.done [#allocation6], 512
    $region21: #{tpu_custom_call.1} parent=1 // pred_fallthru
      _
    %v45 = vld [vmem:[#allocation2] sm:$0xff]
    %v46 = vld [vmem:[#allocation5] sm:$0xff]
    %v47 = vld [vmem:[#allocation5 + $0x8] sm:$0xff]
    %v48 = vld [vmem:[#allocation5 + $0x10] sm:$0xff]
    %v49 = vld [vmem:[#allocation5 + $0x18] sm:$0xff]
    %v50 = vld [vmem:[%s2] sm:$0x1]
    %v52 = vperm.slane %v50, 0
    %vm54 = vcmask 261120
    %v56 = vsel %vm54, %v45, 0
    %58 = vmatpush.msra.mxu0 0.0
    %59 = vmatpush.msra.mxu0 0.0
    %60 = vmatpush.msra.mxu0 0.0
    %61 = vmatpush.msra.mxu0 0.0
    %62 = vmatpush.msra.mxu0 0.0
    %63 = vmatpush.msra.mxu0 0.0
    %64 = vmatpush.msra.mxu0 0.0
    %65 = vmatpush.msra.mxu0 0.0
    %66 = vmatpush.msra.mxu0 0.0
    %67 = vmatpush.msra.mxu0 0.0
    %68 = vmatpush.msra.mxu0 0.0
    %69 = vmatpush.msra.mxu0 0.0
    %70 = vmatpush.msra.mxu0 %v49
    %71 = vmatpush.msra.mxu0 %v48
    %72 = vmatpush.msra.mxu0 %v47
    %73 = vmatpush.msra.mxu0 %v46
    %74 = vmatmul.f32.gmra.mxu0 %v56
    %v75 = vpop.f32.mrf.mxu0
    %v76 = vadd.f32 %v52, %v75
    %77 = vdwg.mxu0
    %v78 = vlaneseq
    %v79 = vand.u32 %v78, 127
    %vm80 = vcmp.lt.s32.totalorder %v79, 5
    %v81 = vsel %vm80, %v76, -inf
    %82 = vmax.xlane.f32.xlu0 %v81
    %v83 = vpop.xlane.xlu0 %82
    %v84 = vsub.f32 %v76, %v83
    %v85 = vmul.f32 %v84, 1.442695
    %v86 = vpow.pop %v85
    %v87 = vsel %vm80, %v86, 0.0
    %88 = vadd.xlane.f32.xlu0 %v87
    %v89 = vpop.xlane.xlu0 %88
    %v90 = vrcp.pop %v89
    %v91 = vmul.f32 %v89, %v90
    %v92 = vsub.f32 1.0, %v91
    %v93 = vmul.f32 %v90, %v92
    %v94 = vadd.f32 %v90, %v93
    %vm95 = vweird.f32 %v89
    %vm96 = vweird.f32 %v90
    %vm97 = vmor %vm95, %vm96
    %v98 = vsel %vm97, %v90, %v94
    %v99 = vand.u32 2147483647, %v89
    %vm100 = vcmp.eq.f32.partialorder %v99, 8.507059e+37
    %v101 = vand.u32 %v89, 2147483648
    %v102 = vor.u32 1.1754944e-38, %v101
    %v103 = vsel %vm100, %v102, %v98
    %v104 = vmul.f32 %v87, %v103
    %v105 = vmul.f32 %v83, 1.442695
    %v106 = vpow.pop %v105
    %v107 = vmul.f32 %v86, %v106
    %vm108 = vcmp.ge.s32.totalorder %v79, 5
    %vm109 = vcmp.lt.s32.totalorder %v79, 25
    %vm110 = vmand %vm108, %vm109
    %v111 = vsel %vm110, %v107, %v76
    %v112 = vsel %vm80, %v104, %v111
    %113 = vst [vmem:[#allocation7] sm:$0xff] %v112
    // Predicated region
    $region22: #{tpu_custom_call.1} parent=1 // pred_check
      _
    $region23: #{tpu_custom_call.1} parent=1 // pred_check_branch
      %115 = sbr.rel (0) target = $region25
    $region24: #{tpu_custom_call.1} parent=1 // pred_region
      %117 = vsyncadd [#allocation4], 0
      %s119 = sshll.u32 [#allocation7], 4
      %s120 = int_to_ptr.vmem [resolvable:$true] %s119
      %s121 = sshll.u32 %s3, 4
      %s122 = int_to_ptr.hbm [resolvable:$true] %s121
      %124 = dma.vmem_to_hbm [thread:$0]  %s120, 128, %s122, [#allocation4]
    $region25: #{tpu_custom_call.1} parent=1 // pred_fallthru
      _
    // Predicated region
    $region26: #{tpu_custom_call.1} parent=1 // pred_check
      _
    $region27: #{tpu_custom_call.1} parent=1 // pred_check_branch
      %126 = sbr.rel (0) target = $region29
    $region28: #{tpu_custom_call.1} parent=1 // pred_region
      %128 = dma.done [#allocation4], 128
    $region29: #{tpu_custom_call.1} parent=1 // pred_fallthru
      _
    %129 = vsyncpa [#allocation3], 1
    %130 = vsyncpa [#allocation6], 1
    %131 = vsyncpa [#allocation4], 1

// kernel: tpu_custom_call.1
$region0: #{tpu_custom_call.1}
  #allocation0 [shape = 'u32[]', space=smem, size = 0x4, offset = 0x4, fixed_abs, tag = 'smem constant byte address 0x4 - core index']
  #allocation1 [shape = 'u32[72,128]{1,0:T(1,128)}', space=vmem, size = 0x9000, scoped, tag = 'internal scratch']
  %s0 = inlined_call_operand.hbm [shape: f32[8,32], index: 0, kind: input, shape index: {}]
  %s1 = inlined_call_operand.hbm [shape: f32[32,128], index: 1, kind: input, shape index: {}]
  %s2 = inlined_call_operand.vmem [shape: f32[1,128], index: 2, kind: input, shape index: {}]
  %s3 = inlined_call_operand.hbm [shape: f32[8,128], index: 3, kind: output, shape index: {}]
  %s4 = sld [smem:[#allocation0]]
  $region30: #{tpu_custom_call.1} parent=0
    _
  %s6 = ssub.s32 1, %s4
  %s7 = scalar_select 0, %s6, %s4
  $region1: #{tpu_custom_call.1} parent=0
    #allocation2 [shape = 'u8[4096]{0}', space=vmem, size = 0x1000, scoped, tag = 'input window, operand 0, single buffered']
    #allocation3 [shape = 's32[1]{0}', space=sflag, size = 0x4, scoped, tag = 'scoped memory for tpu_custom_call.1']
    #allocation4 [shape = 's32[1]{0}', space=sflag, size = 0x4, scoped, tag = 'scoped memory for tpu_custom_call.1']
    #allocation5 [shape = 'u8[16384]{0}', space=vmem, size = 0x4000, scoped, tag = 'input window, operand 1, single buffered']
    #allocation6 [shape = 's32[1]{0}', space=sflag, size = 0x4, scoped, tag = 'scoped memory for tpu_custom_call.1']
    #allocation7 [shape = 'u8[4096]{0}', space=vmem, size = 0x1000, scoped, tag = 'output window, operand 0, single buffered']
    %8 = vsyncpa [#allocation3], 0
    %9 = vsyncpa [#allocation6], 0
    %10 = vsyncpa [#allocation4], 0
    // Predicated region
    $region2: #{tpu_custom_call.1} parent=1 // pred_check
      _
    $region3: #{tpu_custom_call.1} parent=1 // pred_check_branch
      %12 = sbr.rel (0) target = $region5
    $region4: #{tpu_custom_call.1} parent=1 // pred_region
      %14 = vsyncadd [#allocation3], 0
      %s16 = sshll.u32 %s0, 4
      %s17 = int_to_ptr.hbm [resolvable:$true] %s16
      %s18 = sshll.u32 [#allocation2], 4
      %s19 = int_to_ptr.vmem [resolvable:$true] %s18
      %21 = dma.hbm_to_vmem [thread:$0]  %s17, 128, %s19, [#allocation3]
    $region5: #{tpu_custom_call.1} parent=1 // pred_fallthru
      _
    // Predicated region
    $region6: #{tpu_custom_call.1} parent=1 // pred_check
      _
    $region7: #{tpu_custom_call.1} parent=1 // pred_check_branch
      %23 = sbr.rel (0) target = $region9
    $region8: #{tpu_custom_call.1} parent=1 // pred_region
      %25 = vsyncadd [#allocation6], 0
      %s26 = sshll.u32 %s1, 4
      %s27 = int_to_ptr.hbm [resolvable:$true] %s26
      %s28 = sshll.u32 [#allocation5], 4
      %s29 = int_to_ptr.vmem [resolvable:$true] %s28
      %34 = dma.hbm_to_vmem [thread:$0]  %s27, 512, %s29, [#allocation6], 128, 128, 8
    $region9: #{tpu_custom_call.1} parent=1 // pred_fallthru
      _
    // Predicated region
    $region10: #{tpu_custom_call.1} parent=1 // pred_check
      _
    $region11: #{tpu_custom_call.1} parent=1 // pred_check_branch
      %36 = sbr.rel (0) target = $region13
    $region12: #{tpu_custom_call.1} parent=1 // pred_region
      _
    $region13: #{tpu_custom_call.1} parent=1 // pred_fallthru
      _
    // Predicated region
    $region14: #{tpu_custom_call.1} parent=1 // pred_check
      _
    $region15: #{tpu_custom_call.1} parent=1 // pred_check_branch
      %38 = sbr.rel (0) target = $region17
    $region16: #{tpu_custom_call.1} parent=1 // pred_region
      %40 = dma.done [#allocation3], 128
    $region17: #{tpu_custom_call.1} parent=1 // pred_fallthru
      _
    // Predicated region
    $region18: #{tpu_custom_call.1} parent=1 // pred_check
      _
    $region19: #{tpu_custom_call.1} parent=1 // pred_check_branch
      %42 = sbr.rel (0) target = $region21
    $region20: #{tpu_custom_call.1} parent=1 // pred_region
      %44 = dma.done [#allocation6], 512
    $region21: #{tpu_custom_call.1} parent=1 // pred_fallthru
      _
    %v45 = vld [vmem:[#allocation2] sm:$0xff]
    %v46 = vld [vmem:[#allocation5] sm:$0xff]
    %v47 = vld [vmem:[#allocation5 + $0x8] sm:$0xff]
    %v48 = vld [vmem:[#allocation5 + $0x10] sm:$0xff]
    %v49 = vld [vmem:[#allocation5 + $0x18] sm:$0xff]
    %v50 = vld [vmem:[%s2] sm:$0x1]
    %v52 = vperm.slane %v50, 0
    %vm54 = vcmask 261120
    %v56 = vsel %vm54, %v45, 0
    %58 = vmatpush.msra.mxu0 0.0
    %59 = vmatpush.msra.mxu0 0.0
    %60 = vmatpush.msra.mxu0 0.0
    %61 = vmatpush.msra.mxu0 0.0
    %62 = vmatpush.msra.mxu0 0.0
    %63 = vmatpush.msra.mxu0 0.0
    %64 = vmatpush.msra.mxu0 0.0
    %65 = vmatpush.msra.mxu0 0.0
    %66 = vmatpush.msra.mxu0 0.0
    %67 = vmatpush.msra.mxu0 0.0
    %68 = vmatpush.msra.mxu0 0.0
    %69 = vmatpush.msra.mxu0 0.0
    %70 = vmatpush.msra.mxu0 %v49
    %71 = vmatpush.msra.mxu0 %v48
    %72 = vmatpush.msra.mxu0 %v47
    %73 = vmatpush.msra.mxu0 %v46
    %74 = vmatmul.f32.gmra.mxu0 %v56
    %v75 = vpop.f32.mrf.mxu0
    %v76 = vadd.f32 %v52, %v75
    %77 = vdwg.mxu0
    %v78 = vlaneseq
    %v79 = vand.u32 %v78, 127
    %vm80 = vcmp.lt.s32.totalorder %v79, 5
    %v81 = vsel %vm80, %v76, -inf
    %82 = vmax.xlane.f32.xlu0 %v81
    %v83 = vpop.xlane.xlu0 %82
    %v84 = vsub.f32 %v76, %v83
    %v85 = vmul.f32 %v84, 1.442695
    %v86 = vpow.pop %v85
    %v87 = vsel %vm80, %v86, 0.0
    %88 = vadd.xlane.f32.xlu0 %v87
    %v89 = vpop.xlane.xlu0 %88
    %v90 = vrcp.pop %v89
    %v91 = vmul.f32 %v89, %v90
    %v92 = vsub.f32 1.0, %v91
    %v93 = vmul.f32 %v90, %v92
    %v94 = vadd.f32 %v90, %v93
    %vm95 = vweird.f32 %v89
    %vm96 = vweird.f32 %v90
    %vm97 = vmor %vm95, %vm96
    %v98 = vsel %vm97, %v90, %v94
    %v99 = vand.u32 2147483647, %v89
    %vm100 = vcmp.eq.f32.partialorder %v99, 8.507059e+37
    %v101 = vand.u32 %v89, 2147483648
    %v102 = vor.u32 1.1754944e-38, %v101
    %v103 = vsel %vm100, %v102, %v98
    %v104 = vmul.f32 %v87, %v103
    %v105 = vmul.f32 %v83, 1.442695
    %v106 = vpow.pop %v105
    %v107 = vmul.f32 %v86, %v106
    %vm108 = vcmp.ge.s32.totalorder %v79, 5
    %vm109 = vcmp.lt.s32.totalorder %v79, 25
    %vm110 = vmand %vm108, %vm109
    %v111 = vsel %vm110, %v107, %v76
    %v112 = vsel %vm80, %v104, %v111
    %113 = vst [vmem:[#allocation7] sm:$0xff] %v112
    // Predicated region
    $region22: #{tpu_custom_call.1} parent=1 // pred_check
      _
    $region23: #{tpu_custom_call.1} parent=1 // pred_check_branch
      %115 = sbr.rel (0) target = $region25
    $region24: #{tpu_custom_call.1} parent=1 // pred_region
      %117 = vsyncadd [#allocation4], 0
      %s119 = sshll.u32 [#allocation7], 4
      %s120 = int_to_ptr.vmem [resolvable:$true] %s119
      %s121 = sshll.u32 %s3, 4
      %s122 = int_to_ptr.hbm [resolvable:$true] %s121
      %124 = dma.vmem_to_hbm [thread:$0]  %s120, 128, %s122, [#allocation4]
    $region25: #{tpu_custom_call.1} parent=1 // pred_fallthru
      _
    // Predicated region
    $region26: #{tpu_custom_call.1} parent=1 // pred_check
      _
    $region27: #{tpu_custom_call.1} parent=1 // pred_check_branch
      %126 = sbr.rel (0) target = $region29
    $region28: #{tpu_custom_call.1} parent=1 // pred_region
      %128 = dma.done [#allocation4], 128
    $region29: #{tpu_custom_call.1} parent=1 // pred_fallthru
      _
    %129 = vsyncpa [#allocation3], 1
    %130 = vsyncpa [#allocation6], 1
    %131 = vsyncpa [#allocation4], 1

</llo_original>
